<compile_context>
chip_gen: v7x
topology: tpu7x:2x2x1
jax: 0.10.0
libtpu: 0.0.40
codegen_flags: <defaults>
</compile_context>

<pallas_src>
import jax
import jax.numpy as jnp
from jax.experimental import pallas as pl
from jax.experimental.pallas import tpu as pltpu


_SECTION_ALIGN = 16  # bf16 packs 16 rows per (8,128) vreg; align slab sections to it.


def _round_up(n, m):
    return -(-n // m) * m


def _make_kernel(input_size, hidden_size, output_size, dense_out):
    F, H, O = input_size, hidden_size, output_size
    off1 = 0
    off2 = _round_up(F + 1, _SECTION_ALIGN)
    off3 = off2 + _round_up(H + 1, _SECTION_ALIGN)

    def kernel(x_ref, w_ref, o_ref):
        tb = x_ref.shape[0]

        # bf16 operands for the MXU; f32 accumulation; f32 elementwise (v5e VPU).
        x = x_ref[...].astype(jnp.bfloat16)

        # fc1 + ReLU   (weights = rows [off1, off1+F), bias = next row)
        h = jnp.dot(x, w_ref[off1:off1 + F, :], preferred_element_type=jnp.float32)
        h = jnp.maximum(h + w_ref[off1 + F:off1 + F + 1, :].astype(jnp.float32), 0.0)

        # fc2 + ReLU
        h = jnp.dot(h.astype(jnp.bfloat16), w_ref[off2:off2 + H, :],
                    preferred_element_type=jnp.float32)
        h = jnp.maximum(h + w_ref[off2 + H:off2 + H + 1, :].astype(jnp.float32), 0.0)

        # fc3 (weight columns padded out to H with zeros at pack time)
        y = jnp.dot(h.astype(jnp.bfloat16), w_ref[off3:off3 + H, :],
                    preferred_element_type=jnp.float32)
        y = y + w_ref[off3 + H:off3 + H + 1, :].astype(jnp.float32)
        y = y[:, :O]

        if dense_out:
            # Row-major relayout to a full-128-lane store target (vst instead of
            # 1/32-lane vst.msk). Costs an in-kernel relayout, saves on the store path.
            y = y.reshape(tb * O // 128, 128)

        o_ref[...] = y.astype(o_ref.dtype)

    return kernel


def _pick_block(batch, max_tb):
    """Batch tile size (multiple of 8). Big tiles amortize ~0.35us/step overhead."""
    if batch <= max_tb:
        # Keep >=2 grid steps for v7x's 2 TensorCores when the batch is big enough
        # to be worth splitting; on 1-TC chips the extra step is noise.
        if batch >= 1024 and batch % 16 == 0:
            return batch // 2
        return batch
    # Largest multiple-of-8 divisor of batch that fits.
    tb = (max_tb // 8) * 8
    while tb >= 8:
        if batch % tb == 0:
            return tb
        tb -= 8
    # Ragged fallback: last tile computes on undefined rows, Pallas discards them.
    return min(batch, max_tb)


def quantile_regression_net_forward(x, packed, *, block_b=16384):
    """x: [B, input_size] f32.  packed: dict from pack_params (single bf16 slab).

    VMEM footprint ~ 2*(tb*F*4) + 2*(tb*out*4) + slab bytes; even tb=32768 at
    F=16/out=4 is ~10 MiB, well under the 32 MiB scoped default on all of
    v5e/v6e/v7x, so no vmem_limit_bytes override is needed.
    """
    B, F = x.shape
    slab = packed["slab"]
    H = packed["hidden_size"]
    out_size = packed["output_size"]
    assert packed["input_size"] == F

    tb = _pick_block(B, block_b)
    grid = (pl.cdiv(B, tb),)

    # Lane-dense output path: [B, out] viewed byte-identically as [B*out/128, 128].
    dense_out = (
        (B * out_size) % 128 == 0
        and B % tb == 0
        and ((tb * out_size) % 1024 == 0 or tb == B)  # (8,128)-legal block rows
    )

    kernel = _make_kernel(F, H, out_size, dense_out)

    if dense_out:
        out_shape = jax.ShapeDtypeStruct((B * out_size // 128, 128), x.dtype)
        out_spec = pl.BlockSpec((tb * out_size // 128, 128), lambda i: (i, 0))
    else:
        out_shape = jax.ShapeDtypeStruct((B, out_size), x.dtype)
        out_spec = pl.BlockSpec((tb, out_size), lambda i: (i, 0))

    flops = 2 * B * (F * H + H * H + H * out_size)
    bytes_accessed = 4 * B * (F + out_size) + 2 * slab.size  # bf16 slab

    y = pl.pallas_call(
        kernel,
        out_shape=out_shape,
        grid=grid,
        in_specs=[
            pl.BlockSpec((tb, F), lambda i: (i, 0)),      # batch-tiled input
            pl.BlockSpec(slab.shape, lambda i: (0, 0)),   # weights stay VMEM-resident
        ],
        out_specs=out_spec,
        compiler_params=pltpu.CompilerParams(dimension_semantics=("parallel",)),
        cost_estimate=pl.CostEstimate(
            flops=flops, transcendentals=0, bytes_accessed=bytes_accessed),
    )(x, slab)

    if dense_out:
        y = y.reshape(B, out_size)  # free: same row-major bytes
    return y


def pack_params(params, dtype=jnp.bfloat16):
    """One-time layout conversion: PyTorch nn.Linear params (W [out,in], b [out])
    -> a single merged slab.  Each layer contributes rows [W.T ; b ; zero pad],
    padded to _SECTION_ALIGN rows and to hidden_size columns (fc3 zero-padded)."""
    w1, b1 = params["w1"], params["b1"]
    w2, b2 = params["w2"], params["b2"]
    w3, b3 = params["w3"], params["b3"]
    H, F = w1.shape
    O = w3.shape[0]
    assert O <= H, "kernel packs fc3 into hidden_size columns (output_size <= hidden_size)"
    ncols = H

    def section(w, b):
        rows = jnp.concatenate([w.T, b[None, :]], axis=0)  # [in+1, out]
        pad_r = _round_up(rows.shape[0], _SECTION_ALIGN) - rows.shape[0]
        pad_c = ncols - rows.shape[1]
        return jnp.pad(rows, ((0, pad_r), (0, pad_c)))

    slab = jnp.concatenate(
        [section(w1, b1), section(w2, b2), section(w3, b3)], axis=0).astype(dtype)
    return {"slab": slab, "input_size": F, "hidden_size": H, "output_size": O}


def init_params(key, input_size, output_size, hidden_size):
    """Deterministic synthetic init with PyTorch nn.Linear shapes/convention."""
    ks = jax.random.split(key, 6)

    def lin(kw, kb, fan_in, fan_out):
        bound = 1.0 / jnp.sqrt(fan_in)
        w = jax.random.uniform(kw, (fan_out, fan_in), jnp.float32, -bound, bound)
        b = jax.random.uniform(kb, (fan_out,), jnp.float32, -bound, bound)
        return w, b

    w1, b1 = lin(ks[0], ks[1], input_size, hidden_size)
    w2, b2 = lin(ks[2], ks[3], hidden_size, hidden_size)
    w3, b3 = lin(ks[4], ks[5], hidden_size, output_size)
    return {"w1": w1, "b1": b1, "w2": w2, "b2": b2, "w3": w3, "b3": b3}


if __name__ == "__main__":
    key = jax.random.PRNGKey(0)
    kx, kp, kx2, kx3 = jax.random.split(key, 4)

    input_size, hidden_size, output_size = 16, 32, 4
    params = init_params(kp, input_size, output_size, hidden_size)
    packed = pack_params(params)  # one-time packing; no per-call transposes

    def ref_fwd(xv):
        h = jnp.maximum(xv @ params["w1"].T + params["b1"], 0.0)
        h = jnp.maximum(h @ params["w2"].T + params["b2"], 0.0)
        return h @ params["w3"].T + params["b3"]

    def check(out, xv):
        ref = ref_fwd(xv)
        assert out.shape == ref.shape
        # bf16 matmul operands (f32 accumulation) -> ~1e-2-level agreement vs f32 ref.
        assert jnp.allclose(out, ref, atol=3e-2, rtol=3e-2), \
            float(jnp.max(jnp.abs(out - ref)))

    # Small batch: single grid step, masked (non-lane-dense) output path.
    x = jax.random.normal(kx, (8, input_size), dtype=jnp.float32)
    check(jax.block_until_ready(quantile_regression_net_forward(x, packed)), x)

    # Medium batch: lane-dense output path (B*out % 128 == 0), single tile.
    x2 = jax.random.normal(kx2, (256, input_size), dtype=jnp.float32)
    check(jax.block_until_ready(quantile_regression_net_forward(x2, packed)), x2)

    # Larger batch: >=2 grid steps (v7x dual-TC sharding), lane-dense output,
    # weight slab resident in VMEM across iterations.
    x3 = jax.random.normal(kx3, (4096, input_size), dtype=jnp.float32)
    check(jax.block_until_ready(quantile_regression_net_forward(x3, packed)), x3)

    # TODO(synk): dropout / batch_norm branches of the PyTorch module are not
    # implemented (module defaults are False; forward semantics unchanged).
    print("KERNEL_OK")
</pallas_src>

<mosaic_0001>
module attributes {stable_mosaic.version = 11 : i64} {
  func.func @kernel(%arg0: i32, %arg1: memref<8x16xf32, #tpu.memory_space<vmem>>, %arg2: memref<128x32xbf16, #tpu.memory_space<vmem>>, %arg3: memref<8x4xf32, #tpu.memory_space<vmem>>) attributes {dimension_semantics = [#tpu.dimension_semantics<parallel>], iteration_bounds = array<i64: 1>, scalar_prefetch = 0 : i64, scratch_operands = 0 : i64, tpu.core_type = #tpu.core_type<tc>, window_params = [{transform_indices = @transform_0, window_bounds = array<i64: 8, 16>}, {pipeline_mode = #tpu.pipeline_mode<synchronous>, transform_indices = @transform_1, window_bounds = array<i64: 128, 32>}, {transform_indices = @transform_2, window_bounds = array<i64: 8, 4>}]} {
    %c0 = arith.constant 0 : index
    %c0_0 = arith.constant 0 : index
    %0 = vector.load %arg1[%c0, %c0_0] : memref<8x16xf32, #tpu.memory_space<vmem>>, vector<8x16xf32>
    %1 = arith.truncf %0 : vector<8x16xf32> to vector<8x16xbf16>
    %c0_1 = arith.constant 0 : index
    %c0_2 = arith.constant 0 : index
    %2 = vector.load %arg2[%c0_1, %c0_2] : memref<128x32xbf16, #tpu.memory_space<vmem>>, vector<16x32xbf16>
    %cst = arith.constant dense<0.000000e+00> : vector<8x32xf32>
    %3 = tpu.matmul %1, %2, %cst {dimension_numbers = #tpu.dot_dimension_numbers<[1], [0], [0], [1], [0, 0, 1, 1], [], []>} : vector<8x16xbf16>, vector<16x32xbf16>, vector<8x32xf32> -> vector<8x32xf32>
    %c16 = arith.constant 16 : index
    %c0_3 = arith.constant 0 : index
    %4 = vector.load %arg2[%c16, %c0_3] : memref<128x32xbf16, #tpu.memory_space<vmem>>, vector<1x32xbf16>
    %5 = arith.extf %4 : vector<1x32xbf16> to vector<1x32xf32>
    %6 = vector.broadcast %5 : vector<1x32xf32> to vector<8x32xf32>
    %7 = arith.addf %3, %6 : vector<8x32xf32>
    %cst_4 = arith.constant 0.000000e+00 : f32
    %8 = vector.broadcast %cst_4 : f32 to vector<8x32xf32>
    %9 = arith.maximumf %7, %8 : vector<8x32xf32>
    %10 = arith.truncf %9 : vector<8x32xf32> to vector<8x32xbf16>
    %c32 = arith.constant 32 : index
    %c0_5 = arith.constant 0 : index
    %11 = vector.load %arg2[%c32, %c0_5] : memref<128x32xbf16, #tpu.memory_space<vmem>>, vector<32x32xbf16>
    %cst_6 = arith.constant dense<0.000000e+00> : vector<8x32xf32>
    %12 = tpu.matmul %10, %11, %cst_6 {dimension_numbers = #tpu.dot_dimension_numbers<[1], [0], [0], [1], [0, 0, 1, 1], [], []>} : vector<8x32xbf16>, vector<32x32xbf16>, vector<8x32xf32> -> vector<8x32xf32>
    %c64 = arith.constant 64 : index
    %c0_7 = arith.constant 0 : index
    %13 = vector.load %arg2[%c64, %c0_7] : memref<128x32xbf16, #tpu.memory_space<vmem>>, vector<1x32xbf16>
    %14 = arith.extf %13 : vector<1x32xbf16> to vector<1x32xf32>
    %15 = vector.broadcast %14 : vector<1x32xf32> to vector<8x32xf32>
    %16 = arith.addf %12, %15 : vector<8x32xf32>
    %cst_8 = arith.constant 0.000000e+00 : f32
    %17 = vector.broadcast %cst_8 : f32 to vector<8x32xf32>
    %18 = arith.maximumf %16, %17 : vector<8x32xf32>
    %19 = arith.truncf %18 : vector<8x32xf32> to vector<8x32xbf16>
    %c80 = arith.constant 80 : index
    %c0_9 = arith.constant 0 : index
    %20 = vector.load %arg2[%c80, %c0_9] : memref<128x32xbf16, #tpu.memory_space<vmem>>, vector<32x32xbf16>
    %cst_10 = arith.constant dense<0.000000e+00> : vector<8x32xf32>
    %21 = tpu.matmul %19, %20, %cst_10 {dimension_numbers = #tpu.dot_dimension_numbers<[1], [0], [0], [1], [0, 0, 1, 1], [], []>} : vector<8x32xbf16>, vector<32x32xbf16>, vector<8x32xf32> -> vector<8x32xf32>
    %c112 = arith.constant 112 : index
    %c0_11 = arith.constant 0 : index
    %22 = vector.load %arg2[%c112, %c0_11] : memref<128x32xbf16, #tpu.memory_space<vmem>>, vector<1x32xbf16>
    %23 = arith.extf %22 : vector<1x32xbf16> to vector<1x32xf32>
    %24 = vector.broadcast %23 : vector<1x32xf32> to vector<8x32xf32>
    %25 = arith.addf %21, %24 : vector<8x32xf32>
    %26 = vector.extract_strided_slice %25 {offsets = [0, 0], sizes = [8, 4], strides = [1, 1]} : vector<8x32xf32> to vector<8x4xf32>
    %c0_12 = arith.constant 0 : index
    %c0_13 = arith.constant 0 : index
    %27 = vector.load %arg3[%c0_12, %c0_13] : memref<8x4xf32, #tpu.memory_space<vmem>>, vector<8x4xf32>
    tpu.vector_store %arg3[%c0_12, %c0_13], %26 {strides = array<i32>} : memref<8x4xf32, #tpu.memory_space<vmem>>, vector<8x4xf32>,
    return
  }
  func.func @transform_0(%arg0: i32) -> (i32, i32) {
    %c0_i32 = arith.constant 0 : i32
    %c0_i32_0 = arith.constant 0 : i32
    return %arg0, %c0_i32 : i32, i32
  }
  func.func @transform_1(%arg0: i32) -> (i32, i32) {
    %c0_i32 = arith.constant 0 : i32
    %c0_i32_0 = arith.constant 0 : i32
    %c0_i32_1 = arith.constant 0 : i32
    return %c0_i32, %c0_i32_0 : i32, i32
  }
  func.func @transform_2(%arg0: i32) -> (i32, i32) {
    %c0_i32 = arith.constant 0 : i32
    %c0_i32_0 = arith.constant 0 : i32
    return %arg0, %c0_i32 : i32, i32
  }
}

</mosaic_0001>

<llo_original>
// kernel: tpu_custom_call.1
$region0: #{tpu_custom_call.1}
  #allocation0 [shape = 'u32[]', space=smem, size = 0x4, offset = 0x4, fixed_abs, tag = 'smem constant byte address 0x4 - core index']
  #allocation1 [shape = 'u32[144,128]{1,0:T(1,128)}', space=vmem, size = 0x12000, scoped, tag = 'internal scratch']
  %s0 = inlined_call_operand.vmem [shape: f32[8,16], index: 0, kind: input, shape index: {}]
  %s1 = inlined_call_operand.vmem [shape: bf16[128,32], index: 1, kind: input, shape index: {}]
  %s2 = inlined_call_operand.vmem [shape: f32[8,4], index: 2, kind: output, shape index: {}]
  %s3 = sld [smem:[#allocation0]]
  $region18: #{tpu_custom_call.1} parent=0
    _
  %s5 = ssub.s32 1, %s3
  %s6 = scalar_select 0, %s5, %s3
  // Predicated region
  $region2: #{tpu_custom_call.1} parent=0 // pred_check
    _
  $region3: #{tpu_custom_call.1} parent=0 // pred_check_branch
    %8 = sbr.rel (0) target = $region5
  $region4: #{tpu_custom_call.1} parent=0 // pred_region
    _
  $region5: #{tpu_custom_call.1} parent=0 // pred_fallthru
    _
  // Predicated region
  $region6: #{tpu_custom_call.1} parent=0 // pred_check
    _
  $region7: #{tpu_custom_call.1} parent=0 // pred_check_branch
    %10 = sbr.rel (0) target = $region9
  $region8: #{tpu_custom_call.1} parent=0 // pred_region
    _
  $region9: #{tpu_custom_call.1} parent=0 // pred_fallthru
    _
  %v12 = vld [vmem:[%s0] sm:$0xff]
  %v13 = vpack.c.bf16 %v12, %v12
  %v14 = vld [vmem:[%s1] sm:$0xf]
  %v15 = vld [vmem:[%s1 + $0x4] sm:$0xf]
  %v16 = vld [vmem:[%s1 + $0x8] sm:$0x1]
  %v17 = vunpack.c.l.bf16 %v16
  %v18 = vlaneseq
  %v19 = vshrl.u32 %v18, 7
  %v20 = vsub.s32 0, %v19
  %v21 = vrot.slane %v17, %v20
  %v24 = vunpack.c.l.b16 %v14
  %v25 = vunpack.c.l.b16 %v15
  %v26 = vpack.c.b16 %v25, %v24
  %vm28 = vcmask 130048
  %v30 = vsel %vm28, %v13, 0
  %32 = vmatprep.subr.bf16.mxu0 0
  %33 = vmatpush1.bf16.msra.mxu0 %v26
  %34 = vmatprep.subr.bf16.mxu0 0
  %35 = vmatpush1.bf16.msra.mxu0 0
  %36 = vmatprep.subr.bf16.mxu0 0
  %37 = vmatpush1.bf16.msra.mxu0 0
  %38 = vmatprep.subr.bf16.mxu0 0
  %39 = vmatpush1.bf16.msra.mxu0 0
  %40 = vmatprep.subr.bf16.mxu0 0
  %41 = vmatpush1.bf16.msra.mxu0 0
  %42 = vmatprep.subr.bf16.mxu0 0
  %43 = vmatpush1.bf16.msra.mxu0 0
  %44 = vmatprep.subr.bf16.mxu0 0
  %45 = vmatpush1.bf16.msra.mxu0 0
  %46 = vmatprep.subr.bf16.mxu0 0
  %47 = vmatpush1.bf16.msra.mxu0 0
  %48 = vmatprep.subr.bf16.mxu0 0
  %49 = vmatpush1.bf16.msra.mxu0 0
  %50 = vmatprep.subr.bf16.mxu0 0
  %51 = vmatpush1.bf16.msra.mxu0 0
  %52 = vmatprep.subr.bf16.mxu0 0
  %53 = vmatpush1.bf16.msra.mxu0 0
  %54 = vmatprep.subr.bf16.mxu0 0
  %55 = vmatpush1.bf16.msra.mxu0 0
  %56 = vmatprep.subr.bf16.mxu0 0
  %57 = vmatpush1.bf16.msra.mxu0 0
  %58 = vmatprep.subr.bf16.mxu0 0
  %59 = vmatpush1.bf16.msra.mxu0 0
  %60 = vmatprep.subr.bf16.mxu0 0
  %61 = vmatpush1.bf16.msra.mxu0 0
  %62 = vmatprep.subr.bf16.mxu0 0
  %63 = vmatpush1.bf16.msra.mxu0 0
  %64 = vmatprep.mubr.bf16.mxu0 0
  %65 = vmatmul.mubr.bf16.gmra.mrb[0].mxu0 %v30
  %v66 = vpop.f32.mrb[0].mxu0
  %v67 = vadd.f32 %v21, %v66
  %v68 = vpop.f32.mrb[0].mxu0
  %v69 = vpop.f32.mrb[0].mxu0
  %v70 = vpop.f32.mrb[0].mxu0
  %71 = vdwg.mxu0
  %v72 = vmax.f32 %v67, 0.0
  %v73 = vpack.c.bf16 %v72, %v72
  %v74 = vld [vmem:[%s1 + $0x10] sm:$0xf]
  %v75 = vld [vmem:[%s1 + $0x14] sm:$0xf]
  %v76 = vld [vmem:[%s1 + $0x18] sm:$0xf]
  %v77 = vld [vmem:[%s1 + $0x1c] sm:$0xf]
  %v78 = vld [vmem:[%s1 + $0x20] sm:$0x1]
  %v79 = vunpack.c.l.bf16 %v78
  %v80 = vlaneseq
  %v81 = vshrl.u32 %v80, 7
  %v82 = vsub.s32 0, %v81
  %v83 = vrot.slane %v79, %v82
  %v88 = vunpack.c.l.b16 %v74
  %v89 = vunpack.c.l.b16 %v75
  %v90 = vunpack.c.l.b16 %v76
  %v91 = vunpack.c.l.b16 %v77
  %v92 = vpack.c.b16 %v89, %v88
  %v93 = vpack.c.b16 %v91, %v90
  %vm96 = vcmask 261120
  %v98 = vsel %vm96, %v73, 0
  %100 = vmatprep.subr.bf16.mxu0 0
  %101 = vmatpush1.bf16.msra.mxu0 %v92
  %102 = vmatprep.subr.bf16.mxu0 0
  %103 = vmatpush1.bf16.msra.mxu0 %v93
  %104 = vmatprep.subr.bf16.mxu0 0
  %105 = vmatpush1.bf16.msra.mxu0 0
  %106 = vmatprep.subr.bf16.mxu0 0
  %107 = vmatpush1.bf16.msra.mxu0 0
  %108 = vmatprep.subr.bf16.mxu0 0
  %109 = vmatpush1.bf16.msra.mxu0 0
  %110 = vmatprep.subr.bf16.mxu0 0
  %111 = vmatpush1.bf16.msra.mxu0 0
  %112 = vmatprep.subr.bf16.mxu0 0
  %113 = vmatpush1.bf16.msra.mxu0 0
  %114 = vmatprep.subr.bf16.mxu0 0
  %115 = vmatpush1.bf16.msra.mxu0 0
  %116 = vmatprep.subr.bf16.mxu0 0
  %117 = vmatpush1.bf16.msra.mxu0 0
  %118 = vmatprep.subr.bf16.mxu0 0
  %119 = vmatpush1.bf16.msra.mxu0 0
  %120 = vmatprep.subr.bf16.mxu0 0
  %121 = vmatpush1.bf16.msra.mxu0 0
  %122 = vmatprep.subr.bf16.mxu0 0
  %123 = vmatpush1.bf16.msra.mxu0 0
  %124 = vmatprep.subr.bf16.mxu0 0
  %125 = vmatpush1.bf16.msra.mxu0 0
  %126 = vmatprep.subr.bf16.mxu0 0
  %127 = vmatpush1.bf16.msra.mxu0 0
  %128 = vmatprep.subr.bf16.mxu0 0
  %129 = vmatpush1.bf16.msra.mxu0 0
  %130 = vmatprep.subr.bf16.mxu0 0
  %131 = vmatpush1.bf16.msra.mxu0 0
  %132 = vmatprep.mubr.bf16.mxu0 0
  %133 = vmatmul.mubr.bf16.gmra.mrb[0].mxu0 %v98
  %v134 = vpop.f32.mrb[0].mxu0
  %v135 = vadd.f32 %v83, %v134
  %v136 = vpop.f32.mrb[0].mxu0
  %v137 = vpop.f32.mrb[0].mxu0
  %v138 = vpop.f32.mrb[0].mxu0
  %139 = vdwg.mxu0
  %v140 = vmax.f32 %v135, 0.0
  %v141 = vpack.c.bf16 %v140, %v140
  %v142 = vld [vmem:[%s1 + $0x28] sm:$0xf]
  %v143 = vld [vmem:[%s1 + $0x2c] sm:$0xf]
  %v144 = vld [vmem:[%s1 + $0x30] sm:$0xf]
  %v145 = vld [vmem:[%s1 + $0x34] sm:$0xf]
  %v146 = vld [vmem:[%s1 + $0x38] sm:$0x1]
  %v147 = vunpack.c.l.bf16 %v146
  %v148 = vlaneseq
  %v149 = vshrl.u32 %v148, 7
  %v150 = vsub.s32 0, %v149
  %v151 = vrot.slane %v147, %v150
  %v156 = vunpack.c.l.b16 %v142
  %v157 = vunpack.c.l.b16 %v143
  %v158 = vunpack.c.l.b16 %v144
  %v159 = vunpack.c.l.b16 %v145
  %v160 = vpack.c.b16 %v157, %v156
  %v161 = vpack.c.b16 %v159, %v158
  %v165 = vsel %vm96, %v141, 0
  %167 = vmatprep.subr.bf16.mxu0 0
  %168 = vmatpush1.bf16.msra.mxu0 %v160
  %169 = vmatprep.subr.bf16.mxu0 0
  %170 = vmatpush1.bf16.msra.mxu0 %v161
  %171 = vmatprep.subr.bf16.mxu0 0
  %172 = vmatpush1.bf16.msra.mxu0 0
  %173 = vmatprep.subr.bf16.mxu0 0
  %174 = vmatpush1.bf16.msra.mxu0 0
  %175 = vmatprep.subr.bf16.mxu0 0
  %176 = vmatpush1.bf16.msra.mxu0 0
  %177 = vmatprep.subr.bf16.mxu0 0
  %178 = vmatpush1.bf16.msra.mxu0 0
  %179 = vmatprep.subr.bf16.mxu0 0
  %180 = vmatpush1.bf16.msra.mxu0 0
  %181 = vmatprep.subr.bf16.mxu0 0
  %182 = vmatpush1.bf16.msra.mxu0 0
  %183 = vmatprep.subr.bf16.mxu0 0
  %184 = vmatpush1.bf16.msra.mxu0 0
  %185 = vmatprep.subr.bf16.mxu0 0
  %186 = vmatpush1.bf16.msra.mxu0 0
  %187 = vmatprep.subr.bf16.mxu0 0
  %188 = vmatpush1.bf16.msra.mxu0 0
  %189 = vmatprep.subr.bf16.mxu0 0
  %190 = vmatpush1.bf16.msra.mxu0 0
  %191 = vmatprep.subr.bf16.mxu0 0
  %192 = vmatpush1.bf16.msra.mxu0 0
  %193 = vmatprep.subr.bf16.mxu0 0
  %194 = vmatpush1.bf16.msra.mxu0 0
  %195 = vmatprep.subr.bf16.mxu0 0
  %196 = vmatpush1.bf16.msra.mxu0 0
  %197 = vmatprep.subr.bf16.mxu0 0
  %198 = vmatpush1.bf16.msra.mxu0 0
  %199 = vmatprep.mubr.bf16.mxu0 0
  %200 = vmatmul.mubr.bf16.gmra.mrb[0].mxu0 %v165
  %v201 = vpop.f32.mrb[0].mxu0
  %v202 = vadd.f32 %v151, %v201
  %v203 = vpop.f32.mrb[0].mxu0
  %v204 = vpop.f32.mrb[0].mxu0
  %v205 = vpop.f32.mrb[0].mxu0
  %206 = vdwg.mxu0
  %vm207 = vcmask 31744
  %208 = vst.msk [vmem:[%s2] sm:$0xff] %vm207, %v202
  // Predicated region
  $region10: #{tpu_custom_call.1} parent=0 // pred_check
    _
  $region11: #{tpu_custom_call.1} parent=0 // pred_check_branch
    %210 = sbr.rel (0) target = $region13
  $region12: #{tpu_custom_call.1} parent=0 // pred_region
    _
  $region13: #{tpu_custom_call.1} parent=0 // pred_fallthru
    _
  // Predicated region
  $region14: #{tpu_custom_call.1} parent=0 // pred_check
    _
  $region15: #{tpu_custom_call.1} parent=0 // pred_check_branch
    %212 = sbr.rel (0) target = $region17
  $region16: #{tpu_custom_call.1} parent=0 // pred_region
    _
  $region17: #{tpu_custom_call.1} parent=0 // pred_fallthru
    _

</llo_original>
